<compile_context>
chip_gen: v7x
topology: tpu7x:2x2x1
jax: 0.10.0
libtpu: 0.0.40
codegen_flags: <defaults>
</compile_context>

<pallas_src>
import jax
import jax.numpy as jnp
from jax.experimental import pallas as pl
from jax.experimental.pallas import tpu as pltpu

HIDDEN = 128      # fc1 width (fixed by the module)
NPAD = 128        # lane-dense width used only for in-kernel softmax math


def policy_kernel(x_ref, w1_ref, b1_ref, w2_ref, b2_ref, out_ref):
    # x: (TB, S) f32, w1: (S, 128) bf16, w2: (128, 128) bf16 (cols >= A are 0)
    # b1: (1, 128) f32, b2: (1, 128) f32 (lanes >= A are -1e30)
    # out: (TB, A) f32
    a = out_ref.shape[-1]
    x = x_ref[...].astype(jnp.bfloat16)                                   # trivial VPU cast
    h = jnp.dot(x, w1_ref[...], preferred_element_type=jnp.float32)      # (TB, 128) f32
    h = jnp.maximum(h + b1_ref[...], 0.0)                                 # bias+ReLU in f32
    logits = jnp.dot(h.astype(jnp.bfloat16), w2_ref[...],
                     preferred_element_type=jnp.float32) + b2_ref[...]    # (TB, 128) f32
    # numerically-stable softmax over the lane-dense padded last dim;
    # padded lanes are -1e30 so they exp() to exactly 0 and never win the max.
    m = jnp.max(logits, axis=-1, keepdims=True)
    e = jnp.exp(logits - m)
    denom = jnp.sum(e, axis=-1, keepdims=True)
    # exact divide (free here -- kernel is not EUP bound) and narrow store.
    out_ref[...] = (e[:, :a] / denom).astype(out_ref.dtype)


def _round_up(n, m):
    return ((n + m - 1) // m) * m


def prepare_params(w1, b1, w2, b2):
    """One-time weight prep (pad/cast); reuse the result across forward calls."""
    S, H = w1.shape
    H2, A = w2.shape
    assert H == HIDDEN and H2 == HIDDEN
    w2p = jnp.zeros((HIDDEN, NPAD), jnp.float32).at[:, :A].set(
        w2.astype(jnp.float32))
    # large finite negative (not -inf) so max-subtraction never yields NaN.
    b2p = jnp.full((1, NPAD), -1e30, jnp.float32).at[:, :A].set(
        b2.astype(jnp.float32).reshape(1, A))
    return {
        "w1": w1.astype(jnp.bfloat16),                       # (S, 128) bf16
        "b1": b1.astype(jnp.float32).reshape(1, HIDDEN),     # (1, 128) f32
        "w2p": w2p.astype(jnp.bfloat16),                     # (128, 128) bf16
        "b2p": b2p,                                          # (1, 128) f32
        "state_dim": S,
        "action_dim": A,
    }


def policy_forward(x, params, *, tb=2048):
    """x: (B, S) f32; params from prepare_params(); returns (B, A) f32 probs."""
    B, S = x.shape
    A = params["action_dim"]
    assert S == params["state_dim"]

    # Batch tiling: TB multiple of 8 (sublane).  Pad batch only if needed.
    TB = tb if B >= tb else _round_up(B, 8)
    Bp = _round_up(B, TB)
    x_p = x if Bp == B else jnp.zeros((Bp, S), x.dtype).at[:B].set(x)

    # Only needed if TB is pushed very large (e.g. >= 8K on v7x's 32 MiB
    # scoped-VMEM default); harmless otherwise.
    vmem_limit = (64 << 20) if TB >= 8192 else None

    out = pl.pallas_call(
        policy_kernel,
        out_shape=jax.ShapeDtypeStruct((Bp, A), jnp.float32),
        grid=(Bp // TB,),
        in_specs=[
            pl.BlockSpec((TB, S), lambda i: (i, 0)),           # x: tiled over batch
            pl.BlockSpec((S, HIDDEN), lambda i: (0, 0)),       # w1: resident
            pl.BlockSpec((1, HIDDEN), lambda i: (0, 0)),       # b1: resident
            pl.BlockSpec((HIDDEN, NPAD), lambda i: (0, 0)),    # w2 (padded): resident
            pl.BlockSpec((1, NPAD), lambda i: (0, 0)),         # b2 (padded): resident
        ],
        out_specs=pl.BlockSpec((TB, A), lambda i: (i, 0)),     # narrow output (TB, A)
        compiler_params=pltpu.CompilerParams(
            dimension_semantics=("parallel",),
            vmem_limit_bytes=vmem_limit),
    )(x_p, params["w1"], params["b1"], params["w2p"], params["b2p"])

    return out if Bp == B else out[:B]


def init_params(key, state_dim, action_dim, hidden=HIDDEN):
    # Deterministic synthetic init (mimics nn.Linear's uniform fan-in init).
    k1, k2, k3, k4 = jax.random.split(key, 4)
    bound1 = 1.0 / (state_dim ** 0.5)
    bound2 = 1.0 / (hidden ** 0.5)
    # stored transposed relative to PyTorch: (in, out)
    w1 = jax.random.uniform(k1, (state_dim, hidden), jnp.float32, -bound1, bound1)
    b1 = jax.random.uniform(k2, (1, hidden), jnp.float32, -bound1, bound1)
    w2 = jax.random.uniform(k3, (hidden, action_dim), jnp.float32, -bound2, bound2)
    b2 = jax.random.uniform(k4, (1, action_dim), jnp.float32, -bound2, bound2)
    return w1, b1, w2, b2


if __name__ == "__main__":
    state_dim = 8     # small continuous observation vector
    action_dim = 4    # number of discrete actions
    batch = 8         # NOTE: at these shapes the call is launch-overhead bound;
                      # amortize by batching many env states into one call.

    key = jax.random.PRNGKey(0)
    k_x, k_p = jax.random.split(key)
    x = jax.random.normal(k_x, (batch, state_dim), jnp.float32)
    w1, b1, w2, b2 = init_params(k_p, state_dim, action_dim)

    # one-time weight prep (reused across every forward call in an RL loop)
    params = prepare_params(w1, b1, w2, b2)

    probs = policy_forward(x, params)
    probs = jax.block_until_ready(probs)
    assert probs.shape == (batch, action_dim)

    # Reference 1: matched precision (bf16 MXU operands, f32 accumulation).
    h_ref = jnp.maximum(
        jnp.dot(x.astype(jnp.bfloat16), w1.astype(jnp.bfloat16),
                preferred_element_type=jnp.float32) + b1, 0.0)
    logits_ref = jnp.dot(h_ref.astype(jnp.bfloat16), w2.astype(jnp.bfloat16),
                         preferred_element_type=jnp.float32) + b2
    probs_ref_bf16 = jax.nn.softmax(logits_ref, axis=-1)
    assert jnp.allclose(probs, probs_ref_bf16, atol=2e-3, rtol=2e-3)

    # Reference 2: original f32 PyTorch semantics (loose tol for bf16 MXU path).
    h32 = jnp.maximum(x @ w1 + b1, 0.0)
    probs_ref_f32 = jax.nn.softmax(h32 @ w2 + b2, axis=-1)
    assert jnp.allclose(probs, probs_ref_f32, atol=2e-2, rtol=2e-2)

    # rows sum to ~1 (exact divide -> f32-rounding-level error only).
    assert jnp.allclose(jnp.sum(probs, axis=-1), 1.0, atol=1e-5)

    print("KERNEL_OK")
</pallas_src>

<mosaic_0001>
module attributes {stable_mosaic.version = 11 : i64} {
  func.func @policy_kernel(%arg0: i32, %arg1: memref<8x8xf32, #tpu.memory_space<vmem>>, %arg2: memref<8x128xbf16, #tpu.memory_space<vmem>>, %arg3: memref<1x128xf32, #tpu.memory_space<vmem>>, %arg4: memref<128x128xbf16, #tpu.memory_space<vmem>>, %arg5: memref<1x128xf32, #tpu.memory_space<vmem>>, %arg6: memref<8x4xf32, #tpu.memory_space<vmem>>) attributes {dimension_semantics = [#tpu.dimension_semantics<parallel>], iteration_bounds = array<i64: 1>, scalar_prefetch = 0 : i64, scratch_operands = 0 : i64, tpu.core_type = #tpu.core_type<tc>, window_params = [{transform_indices = @transform_0, window_bounds = array<i64: 8, 8>}, {pipeline_mode = #tpu.pipeline_mode<synchronous>, transform_indices = @transform_1, window_bounds = array<i64: 8, 128>}, {pipeline_mode = #tpu.pipeline_mode<synchronous>, transform_indices = @transform_2, window_bounds = array<i64: 1, 128>}, {pipeline_mode = #tpu.pipeline_mode<synchronous>, transform_indices = @transform_3, window_bounds = array<i64: 128, 128>}, {pipeline_mode = #tpu.pipeline_mode<synchronous>, transform_indices = @transform_4, window_bounds = array<i64: 1, 128>}, {transform_indices = @transform_5, window_bounds = array<i64: 8, 4>}]} {
    %c0 = arith.constant 0 : index
    %c0_0 = arith.constant 0 : index
    %0 = vector.load %arg1[%c0, %c0_0] : memref<8x8xf32, #tpu.memory_space<vmem>>, vector<8x8xf32>
    %1 = arith.truncf %0 : vector<8x8xf32> to vector<8x8xbf16>
    %c0_1 = arith.constant 0 : index
    %c0_2 = arith.constant 0 : index
    %2 = vector.load %arg2[%c0_1, %c0_2] : memref<8x128xbf16, #tpu.memory_space<vmem>>, vector<8x128xbf16>
    %cst = arith.constant dense<0.000000e+00> : vector<8x128xf32>
    %3 = tpu.matmul %1, %2, %cst {dimension_numbers = #tpu.dot_dimension_numbers<[1], [0], [0], [1], [0, 0, 1, 1], [], []>} : vector<8x8xbf16>, vector<8x128xbf16>, vector<8x128xf32> -> vector<8x128xf32>
    %c0_3 = arith.constant 0 : index
    %c0_4 = arith.constant 0 : index
    %4 = vector.load %arg3[%c0_3, %c0_4] : memref<1x128xf32, #tpu.memory_space<vmem>>, vector<1x128xf32>
    %5 = vector.broadcast %4 : vector<1x128xf32> to vector<8x128xf32>
    %6 = arith.addf %3, %5 : vector<8x128xf32>
    %cst_5 = arith.constant 0.000000e+00 : f32
    %7 = vector.broadcast %cst_5 : f32 to vector<8x128xf32>
    %8 = arith.maximumf %6, %7 : vector<8x128xf32>
    %9 = arith.truncf %8 : vector<8x128xf32> to vector<8x128xbf16>
    %c0_6 = arith.constant 0 : index
    %c0_7 = arith.constant 0 : index
    %10 = vector.load %arg4[%c0_6, %c0_7] : memref<128x128xbf16, #tpu.memory_space<vmem>>, vector<128x128xbf16>
    %cst_8 = arith.constant dense<0.000000e+00> : vector<8x128xf32>
    %11 = tpu.matmul %9, %10, %cst_8 {dimension_numbers = #tpu.dot_dimension_numbers<[1], [0], [0], [1], [0, 0, 1, 1], [], []>} : vector<8x128xbf16>, vector<128x128xbf16>, vector<8x128xf32> -> vector<8x128xf32>
    %c0_9 = arith.constant 0 : index
    %c0_10 = arith.constant 0 : index
    %12 = vector.load %arg5[%c0_9, %c0_10] : memref<1x128xf32, #tpu.memory_space<vmem>>, vector<1x128xf32>
    %13 = vector.broadcast %12 : vector<1x128xf32> to vector<8x128xf32>
    %14 = arith.addf %11, %13 : vector<8x128xf32>
    %cst_11 = arith.constant dense<0xFF800000> : vector<8xf32>
    %15 = vector.multi_reduction <maximumf>, %14, %cst_11 [1] : vector<8x128xf32> to vector<8xf32>
    %16 = vector.shape_cast %15 : vector<8xf32> to vector<8x1xf32>
    %17 = vector.broadcast %16 : vector<8x1xf32> to vector<8x128xf32>
    %18 = arith.subf %14, %17 : vector<8x128xf32>
    %19 = math.exp %18 : vector<8x128xf32>
    %cst_12 = arith.constant dense<0.000000e+00> : vector<8xf32>
    %20 = vector.multi_reduction <add>, %19, %cst_12 [1] : vector<8x128xf32> to vector<8xf32>
    %21 = vector.shape_cast %20 : vector<8xf32> to vector<8x1xf32>
    %22 = vector.extract_strided_slice %19 {offsets = [0, 0], sizes = [8, 4], strides = [1, 1]} : vector<8x128xf32> to vector<8x4xf32>
    %23 = vector.broadcast %21 : vector<8x1xf32> to vector<8x4xf32>
    %24 = arith.divf %22, %23 : vector<8x4xf32>
    %c0_13 = arith.constant 0 : index
    %c0_14 = arith.constant 0 : index
    %25 = vector.load %arg6[%c0_13, %c0_14] : memref<8x4xf32, #tpu.memory_space<vmem>>, vector<8x4xf32>
    tpu.vector_store %arg6[%c0_13, %c0_14], %24 {strides = array<i32>} : memref<8x4xf32, #tpu.memory_space<vmem>>, vector<8x4xf32>,
    return
  }
  func.func @transform_0(%arg0: i32) -> (i32, i32) {
    %c0_i32 = arith.constant 0 : i32
    %c0_i32_0 = arith.constant 0 : i32
    return %arg0, %c0_i32 : i32, i32
  }
  func.func @transform_1(%arg0: i32) -> (i32, i32) {
    %c0_i32 = arith.constant 0 : i32
    %c0_i32_0 = arith.constant 0 : i32
    %c0_i32_1 = arith.constant 0 : i32
    return %c0_i32, %c0_i32_0 : i32, i32
  }
  func.func @transform_2(%arg0: i32) -> (i32, i32) {
    %c0_i32 = arith.constant 0 : i32
    %c0_i32_0 = arith.constant 0 : i32
    %c0_i32_1 = arith.constant 0 : i32
    return %c0_i32, %c0_i32_0 : i32, i32
  }
  func.func @transform_3(%arg0: i32) -> (i32, i32) {
    %c0_i32 = arith.constant 0 : i32
    %c0_i32_0 = arith.constant 0 : i32
    %c0_i32_1 = arith.constant 0 : i32
    return %c0_i32, %c0_i32_0 : i32, i32
  }
  func.func @transform_4(%arg0: i32) -> (i32, i32) {
    %c0_i32 = arith.constant 0 : i32
    %c0_i32_0 = arith.constant 0 : i32
    %c0_i32_1 = arith.constant 0 : i32
    return %c0_i32, %c0_i32_0 : i32, i32
  }
  func.func @transform_5(%arg0: i32) -> (i32, i32) {
    %c0_i32 = arith.constant 0 : i32
    %c0_i32_0 = arith.constant 0 : i32
    return %arg0, %c0_i32 : i32, i32
  }
}

</mosaic_0001>

<llo_original>
// kernel: tpu_custom_call.1
$region0: #{tpu_custom_call.1}
  #allocation0 [shape = 'u32[]', space=smem, size = 0x4, offset = 0x4, fixed_abs, tag = 'smem constant byte address 0x4 - core index']
  #allocation1 [shape = 'u32[144,128]{1,0:T(1,128)}', space=vmem, size = 0x12000, scoped, tag = 'internal scratch']
  %s0 = inlined_call_operand.hbm [shape: f32[8,8], index: 0, kind: input, shape index: {}]
  %s1 = inlined_call_operand.hbm [shape: bf16[8,128], index: 1, kind: input, shape index: {}]
  %s2 = inlined_call_operand.vmem [shape: f32[1,128], index: 2, kind: input, shape index: {}]
  %s3 = inlined_call_operand.hbm [shape: bf16[128,128], index: 3, kind: input, shape index: {}]
  %s4 = inlined_call_operand.vmem [shape: f32[1,128], index: 4, kind: input, shape index: {}]
  %s5 = inlined_call_operand.vmem [shape: f32[8,4], index: 5, kind: output, shape index: {}]
  %s6 = sld [smem:[#allocation0]]
  $region42: #{tpu_custom_call.1} parent=0
    _
  %s8 = ssub.s32 1, %s6
  %s9 = scalar_select 0, %s8, %s6
  $region1: #{tpu_custom_call.1} parent=0
    #allocation2 [shape = 'u8[4096]{0}', space=vmem, size = 0x1000, scoped, tag = 'input window, operand 0, single buffered']
    #allocation3 [shape = 's32[1]{0}', space=sflag, size = 0x4, scoped, tag = 'scoped memory for tpu_custom_call.1']
    #allocation4 [shape = 'u8[2048]{0}', space=vmem, size = 0x800, scoped, tag = 'input window, operand 1, single buffered']
    #allocation5 [shape = 's32[1]{0}', space=sflag, size = 0x4, scoped, tag = 'scoped memory for tpu_custom_call.1']
    #allocation6 [shape = 'u8[32768]{0}', space=vmem, size = 0x8000, scoped, tag = 'input window, operand 3, single buffered']
    %10 = vsyncpa [#allocation3], 0
    %11 = vsyncpa [#allocation5], 0
    // Predicated region
    $region2: #{tpu_custom_call.1} parent=1 // pred_check
      _
    $region3: #{tpu_custom_call.1} parent=1 // pred_check_branch
      %13 = sbr.rel (0) target = $region5
    $region4: #{tpu_custom_call.1} parent=1 // pred_region
      %s15 = ssub.s32 128, 128
      %16 = vsyncadd [#allocation3], %s15
      %s18 = sshll.u32 [#allocation2], 4
      %s19 = int_to_ptr.vmem [resolvable:$true] %s18
      %21 = dma.hbm_to_vmem [thread:$0]  %s0, 128, %s19, [#allocation3]
    $region5: #{tpu_custom_call.1} parent=1 // pred_fallthru
      _
    // Predicated region
    $region6: #{tpu_custom_call.1} parent=1 // pred_check
      _
    $region7: #{tpu_custom_call.1} parent=1 // pred_check_branch
      %23 = sbr.rel (0) target = $region9
    $region8: #{tpu_custom_call.1} parent=1 // pred_region
      %s25 = ssub.s32 64, 64
      %26 = vsyncadd [#allocation5], %s25
      %s28 = sshll.u32 [#allocation4], 4
      %s29 = int_to_ptr.vmem [resolvable:$true] %s28
      %31 = dma.hbm_to_vmem [thread:$0]  %s1, 64, %s29, [#allocation5]
    $region9: #{tpu_custom_call.1} parent=1 // pred_fallthru
      _
    // Predicated region
    $region10: #{tpu_custom_call.1} parent=1 // pred_check
      _
    $region11: #{tpu_custom_call.1} parent=1 // pred_check_branch
      %33 = sbr.rel (0) target = $region13
    $region12: #{tpu_custom_call.1} parent=1 // pred_region
      _
    $region13: #{tpu_custom_call.1} parent=1 // pred_fallthru
      _
    // Predicated region
    $region14: #{tpu_custom_call.1} parent=1 // pred_check
      _
    $region15: #{tpu_custom_call.1} parent=1 // pred_check_branch
      %35 = sbr.rel (0) target = $region17
    $region16: #{tpu_custom_call.1} parent=1 // pred_region
      %s37 = ssub.s32 1024, 1024
      %38 = vsyncadd [#allocation5], %s37
      %s39 = sshll.u32 [#allocation6], 4
      %s40 = int_to_ptr.vmem [resolvable:$true] %s39
      %45 = dma.hbm_to_vmem [thread:$0]  %s3, 1024, %s40, [#allocation5], 64, 64, 4
    $region17: #{tpu_custom_call.1} parent=1 // pred_fallthru
      _
    // Predicated region
    $region18: #{tpu_custom_call.1} parent=1 // pred_check
      _
    $region19: #{tpu_custom_call.1} parent=1 // pred_check_branch
      %47 = sbr.rel (0) target = $region21
    $region20: #{tpu_custom_call.1} parent=1 // pred_region
      _
    $region21: #{tpu_custom_call.1} parent=1 // pred_fallthru
      _
    // Predicated region
    $region22: #{tpu_custom_call.1} parent=1 // pred_check
      _
    $region23: #{tpu_custom_call.1} parent=1 // pred_check_branch
      %49 = sbr.rel (0) target = $region25
    $region24: #{tpu_custom_call.1} parent=1 // pred_region
      %50 = dma.done [#allocation3], 128
    $region25: #{tpu_custom_call.1} parent=1 // pred_fallthru
      _
    // Predicated region
    $region26: #{tpu_custom_call.1} parent=1 // pred_check
      _
    $region27: #{tpu_custom_call.1} parent=1 // pred_check_branch
      %52 = sbr.rel (0) target = $region29
    $region28: #{tpu_custom_call.1} parent=1 // pred_region
      %53 = dma.done [#allocation5], 64
    $region29: #{tpu_custom_call.1} parent=1 // pred_fallthru
      _
    // Predicated region
    $region30: #{tpu_custom_call.1} parent=1 // pred_check
      _
    $region31: #{tpu_custom_call.1} parent=1 // pred_check_branch
      %55 = sbr.rel (0) target = $region33
    $region32: #{tpu_custom_call.1} parent=1 // pred_region
      %56 = dma.done [#allocation5], 1024
    $region33: #{tpu_custom_call.1} parent=1 // pred_fallthru
      _
    %v58 = vld [vmem:[#allocation2] sm:$0xff]
    %v59 = vpack.c.bf16 %v58, %v58
    %v60 = vld [vmem:[#allocation4] sm:$0xf]
    %v61 = vld [vmem:[%s2] sm:$0x1]
    %v63 = vlaneseq
    %v64 = vshrl.u32 %v63, 7
    %v65 = vsub.s32 0, %v64
    %v66 = vrot.slane %v61, %v65
    %vm68 = vcmask 64512
    %v70 = vsel %vm68, %v59, 0
    %vm72 = vcmask 1043456
    %v74 = vsel %vm72, %v60, 0
    %76 = vmatprep.subr.bf16.mxu0 0
    %77 = vmatpush1.bf16.msra.mxu0 %v74
    %78 = vmatprep.subr.bf16.mxu0 0
    %79 = vmatpush1.bf16.msra.mxu0 0
    %80 = vmatprep.subr.bf16.mxu0 0
    %81 = vmatpush1.bf16.msra.mxu0 0
    %82 = vmatprep.subr.bf16.mxu0 0
    %83 = vmatpush1.bf16.msra.mxu0 0
    %84 = vmatprep.subr.bf16.mxu0 0
    %85 = vmatpush1.bf16.msra.mxu0 0
    %86 = vmatprep.subr.bf16.mxu0 0
    %87 = vmatpush1.bf16.msra.mxu0 0
    %88 = vmatprep.subr.bf16.mxu0 0
    %89 = vmatpush1.bf16.msra.mxu0 0
    %90 = vmatprep.subr.bf16.mxu0 0
    %91 = vmatpush1.bf16.msra.mxu0 0
    %92 = vmatprep.subr.bf16.mxu0 0
    %93 = vmatpush1.bf16.msra.mxu0 0
    %94 = vmatprep.subr.bf16.mxu0 0
    %95 = vmatpush1.bf16.msra.mxu0 0
    %96 = vmatprep.subr.bf16.mxu0 0
    %97 = vmatpush1.bf16.msra.mxu0 0
    %98 = vmatprep.subr.bf16.mxu0 0
    %99 = vmatpush1.bf16.msra.mxu0 0
    %100 = vmatprep.subr.bf16.mxu0 0
    %101 = vmatpush1.bf16.msra.mxu0 0
    %102 = vmatprep.subr.bf16.mxu0 0
    %103 = vmatpush1.bf16.msra.mxu0 0
    %104 = vmatprep.subr.bf16.mxu0 0
    %105 = vmatpush1.bf16.msra.mxu0 0
    %106 = vmatprep.subr.bf16.mxu0 0
    %107 = vmatpush1.bf16.msra.mxu0 0
    %108 = vmatprep.mubr.bf16.mxu0 0
    %109 = vmatmul.mubr.bf16.gmra.mrb[0].mxu0 %v70
    %v110 = vpop.f32.mrb[0].mxu0
    %v111 = vadd.f32 %v66, %v110
    %v112 = vpop.f32.mrb[0].mxu0
    %v113 = vpop.f32.mrb[0].mxu0
    %v114 = vpop.f32.mrb[0].mxu0
    %115 = vdwg.mxu0
    %v116 = vmax.f32 %v111, 0.0
    %v117 = vpack.c.bf16 %v116, %v116
    %v118 = vld [vmem:[#allocation6] sm:$0xf]
    %v119 = vld [vmem:[#allocation6 + $0x4] sm:$0xf]
    %v120 = vld [vmem:[#allocation6 + $0x8] sm:$0xf]
    %v121 = vld [vmem:[#allocation6 + $0xc] sm:$0xf]
    %v122 = vld [vmem:[#allocation6 + $0x10] sm:$0xf]
    %v123 = vld [vmem:[#allocation6 + $0x14] sm:$0xf]
    %v124 = vld [vmem:[#allocation6 + $0x18] sm:$0xf]
    %v125 = vld [vmem:[#allocation6 + $0x1c] sm:$0xf]
    %v126 = vld [vmem:[#allocation6 + $0x20] sm:$0xf]
    %v127 = vld [vmem:[#allocation6 + $0x24] sm:$0xf]
    %v128 = vld [vmem:[#allocation6 + $0x28] sm:$0xf]
    %v129 = vld [vmem:[#allocation6 + $0x2c] sm:$0xf]
    %v130 = vld [vmem:[#allocation6 + $0x30] sm:$0xf]
    %v131 = vld [vmem:[#allocation6 + $0x34] sm:$0xf]
    %v132 = vld [vmem:[#allocation6 + $0x38] sm:$0xf]
    %v133 = vld [vmem:[#allocation6 + $0x3c] sm:$0xf]
    %v134 = vld [vmem:[%s4] sm:$0x1]
    %v136 = vlaneseq
    %v137 = vshrl.u32 %v136, 7
    %v138 = vsub.s32 0, %v137
    %v139 = vrot.slane %v134, %v138
    %v157 = vunpack.c.l.b16 %v118
    %v158 = vunpack.c.l.b16 %v119
    %v159 = vunpack.c.l.b16 %v120
    %v160 = vunpack.c.l.b16 %v121
    %v161 = vunpack.c.l.b16 %v122
    %v162 = vunpack.c.l.b16 %v123
    %v163 = vunpack.c.l.b16 %v124
    %v164 = vunpack.c.l.b16 %v125
    %v165 = vunpack.c.l.b16 %v126
    %v166 = vunpack.c.l.b16 %v127
    %v167 = vunpack.c.l.b16 %v128
    %v168 = vunpack.c.l.b16 %v129
    %v169 = vunpack.c.l.b16 %v130
    %v170 = vunpack.c.l.b16 %v131
    %v171 = vunpack.c.l.b16 %v132
    %v172 = vunpack.c.l.b16 %v133
    %v173 = vpack.c.b16 %v158, %v157
    %v174 = vpack.c.b16 %v160, %v159
    %v175 = vpack.c.b16 %v162, %v161
    %v176 = vpack.c.b16 %v164, %v163
    %v177 = vpack.c.b16 %v166, %v165
    %v178 = vpack.c.b16 %v168, %v167
    %v179 = vpack.c.b16 %v170, %v169
    %v180 = vpack.c.b16 %v172, %v171
    %189 = vmatprep.subr.bf16.mxu0 0
    %190 = vmatpush1.bf16.msra.mxu0 %v173
    %191 = vmatprep.subr.bf16.mxu0 0
    %192 = vmatpush1.bf16.msra.mxu0 %v174
    %193 = vmatprep.subr.bf16.mxu0 0
    %194 = vmatpush1.bf16.msra.mxu0 %v175
    %195 = vmatprep.subr.bf16.mxu0 0
    %196 = vmatpush1.bf16.msra.mxu0 %v176
    %197 = vmatprep.subr.bf16.mxu0 0
    %198 = vmatpush1.bf16.msra.mxu0 %v177
    %199 = vmatprep.subr.bf16.mxu0 0
    %200 = vmatpush1.bf16.msra.mxu0 %v178
    %201 = vmatprep.subr.bf16.mxu0 0
    %202 = vmatpush1.bf16.msra.mxu0 %v179
    %203 = vmatprep.subr.bf16.mxu0 0
    %204 = vmatpush1.bf16.msra.mxu0 %v180
    %205 = vmatprep.subr.bf16.mxu0 0
    %206 = vmatpush1.bf16.msra.mxu0 0
    %207 = vmatprep.subr.bf16.mxu0 0
    %208 = vmatpush1.bf16.msra.mxu0 0
    %209 = vmatprep.subr.bf16.mxu0 0
    %210 = vmatpush1.bf16.msra.mxu0 0
    %211 = vmatprep.subr.bf16.mxu0 0
    %212 = vmatpush1.bf16.msra.mxu0 0
    %213 = vmatprep.subr.bf16.mxu0 0
    %214 = vmatpush1.bf16.msra.mxu0 0
    %215 = vmatprep.subr.bf16.mxu0 0
    %216 = vmatpush1.bf16.msra.mxu0 0
    %217 = vmatprep.subr.bf16.mxu0 0
    %218 = vmatpush1.bf16.msra.mxu0 0
    %219 = vmatprep.subr.bf16.mxu0 0
    %220 = vmatpush1.bf16.msra.mxu0 0
    %221 = vmatprep.mubr.bf16.mxu0 0
    %222 = vmatmul.mubr.bf16.gmra.mrb[0].mxu0 %v117
    %v223 = vpop.f32.mrb[0].mxu0
    %v224 = vadd.f32 %v139, %v223
    %v225 = vpop.f32.mrb[0].mxu0
    %v226 = vpop.f32.mrb[0].mxu0
    %v227 = vpop.f32.mrb[0].mxu0
    %228 = vdwg.mxu0
    %229 = vmax.xlane.f32.xlu0 %v224
    %v230 = vpop.xlane.xlu0 %229
    %v231 = vsub.f32 %v224, %v230
    %v232 = vmul.f32 %v231, 1.442695
    %v233 = vpow.pop %v232
    %234 = vadd.xlane.f32.xlu0 %v233
    %v235 = vpop.xlane.xlu0 %234
    %v236 = vrcp.pop %v235
    %v237 = vmul.f32 %v233, %v236
    %vm238 = vcmask 31744
    %239 = vst.msk [vmem:[%s5] sm:$0xff] %vm238, %v237
    // Predicated region
    $region34: #{tpu_custom_call.1} parent=1 // pred_check
      _
    $region35: #{tpu_custom_call.1} parent=1 // pred_check_branch
      %241 = sbr.rel (0) target = $region37
    $region36: #{tpu_custom_call.1} parent=1 // pred_region
      _
    $region37: #{tpu_custom_call.1} parent=1 // pred_fallthru
      _
    // Predicated region
    $region38: #{tpu_custom_call.1} parent=1 // pred_check
      _
    $region39: #{tpu_custom_call.1} parent=1 // pred_check_branch
      %243 = sbr.rel (0) target = $region41
    $region40: #{tpu_custom_call.1} parent=1 // pred_region
      _
    $region41: #{tpu_custom_call.1} parent=1 // pred_fallthru
      _
    %244 = vsyncpa [#allocation3], 1
    %245 = vsyncpa [#allocation5], 1

</llo_original>
